<compile_context>
chip_gen: v5e
topology: v5e:2x2
jax: 0.10.0
libtpu: 0.0.40
codegen_flags: <defaults>
</compile_context>

<pallas_src>
import functools

import jax
import jax.numpy as jnp
from jax.experimental import pallas as pl
from jax.experimental.pallas import tpu as pltpu


_VMEM_LIMIT_BYTES = 48 * 1024 * 1024          # safe on v5e/v6e (128 MiB) and v7x (64 MiB)
_TILE_BUDGET_BYTES = int(_VMEM_LIMIT_BYTES * 0.8)


def _round_up(n, m):
    return ((n + m - 1) // m) * m


def _tile_vmem_bytes(tm, tn, tk, in_isz, out_isz):
    # Double-buffered input/weight/bias/output blocks + f32 accumulator scratch.
    x_blk = 2 * tm * tk * in_isz
    w_blk = 2 * tk * tn * in_isz
    b_blk = 2 * 1 * tn * 4
    o_blk = 2 * tm * tn * out_isz
    acc = tm * tn * 4
    return x_blk + w_blk + b_blk + o_blk + acc


def _select_tn(Np):
    return next(c for c in (512, 256, 128) if c <= Np and Np % c == 0)


def _select_tm_and_bp(Bp, tn, Kp, in_isz, out_isz, budget):
    tk_probe = min(Kp, 512)

    def fits(tm):
        return _tile_vmem_bytes(tm, tn, tk_probe, in_isz, out_isz) <= budget

    # Best case: whole (8-aligned) batch in one i-tile -> W is read from HBM once.
    if fits(Bp):
        return Bp, Bp
    # Otherwise the largest aligned divisor of Bp that fits (no extra padding).
    for c in (4096, 2048, 1024, 512, 256, 128):
        if c < Bp and Bp % c == 0 and fits(c):
            return c, Bp
    # Awkward factors: pad the batch up to a fixed tile instead of using tiny tiles.
    tm = next(c for c in (512, 256, 128, 64, 32, 16, 8) if fits(c))
    return tm, _round_up(Bp, tm)


def _select_tk(Kp, tm, tn, in_isz, out_isz, budget):
    candidates = [Kp] + [c for c in (4096, 2048, 1024, 512, 256, 128)
                         if c < Kp and Kp % c == 0]
    for tk in candidates:
        if _tile_vmem_bytes(tm, tn, tk, in_isz, out_isz) <= budget:
            return tk
    return 128  # Kp is a multiple of 128, and 128 always fits given tm/tn selection.


def sum_linear_kernel(x_ref, w_ref, b_ref, o_ref, acc_ref):
    # x_ref: (tm, tk)  w_ref: (tk, tn)  b_ref: (1, tn) f32  o_ref: (tm, tn)
    # acc_ref: (tm, tn) f32 scratch, resident across the K ("arbitrary") grid axis.
    @pl.when(pl.program_id(2) == 0)
    def _():
        acc_ref[...] = jnp.zeros_like(acc_ref)

    acc_ref[...] += jnp.dot(x_ref[...], w_ref[...],
                            preferred_element_type=jnp.float32)

    @pl.when(pl.program_id(2) == pl.num_programs(2) - 1)
    def _():
        o_ref[...] = (acc_ref[...] + b_ref[...]).astype(o_ref.dtype)


@functools.partial(jax.jit, static_argnames=())
def sum_of_linears(x, w_stack, b_stack):
    """Pallas equivalent of Sum([Linear_0, ..., Linear_{M-1}])(x)."""
    B, D_in = x.shape
    M, D_out, D_in_w = w_stack.shape
    assert D_in == D_in_w and b_stack.shape == (M, D_out)

    # Algebraic fold of the module sum (exact for Linear submodules).
    w_sum_t = jnp.sum(w_stack, axis=0).T.astype(x.dtype)       # (D_in, D_out)
    b_sum = jnp.sum(b_stack, axis=0).astype(jnp.float32)       # (D_out,) in f32

    in_isz = jnp.dtype(x.dtype).itemsize
    out_isz = in_isz

    # Lane/sublane-aligned padded extents.
    Bp = _round_up(B, 8)
    Kp = _round_up(D_in, 128)
    Np = _round_up(D_out, 128)

    # Tile selection against the explicit VMEM budget.
    tn = _select_tn(Np)
    tm, Bp = _select_tm_and_bp(Bp, tn, Kp, in_isz, out_isz, _TILE_BUDGET_BYTES)
    tk = _select_tk(Kp, tm, tn, in_isz, out_isz, _TILE_BUDGET_BYTES)
    assert Bp % tm == 0 and Np % tn == 0 and Kp % tk == 0
    assert tm % 8 == 0 and tn % 128 == 0 and tk % 128 == 0

    # Only materialize padded HBM copies when the shapes actually need it.
    if (B, D_in) == (Bp, Kp):
        xp = x
    else:
        xp = jnp.zeros((Bp, Kp), x.dtype).at[:B, :D_in].set(x)
    if (D_in, D_out) == (Kp, Np):
        wp = w_sum_t
    else:
        wp = jnp.zeros((Kp, Np), x.dtype).at[:D_in, :D_out].set(w_sum_t)
    if D_out == Np:
        bp = b_sum.reshape(1, Np)
    else:
        bp = jnp.zeros((1, Np), jnp.float32).at[0, :D_out].set(b_sum)

    cost = pl.CostEstimate(
        flops=2 * Bp * Kp * Np,
        transcendentals=0,
        bytes_accessed=(Bp * Kp + Kp * Np) * in_isz + Np * 4 + Bp * Np * out_isz,
    )

    out_padded = pl.pallas_call(
        sum_linear_kernel,
        out_shape=jax.ShapeDtypeStruct((Bp, Np), x.dtype),
        grid=(Bp // tm, Np // tn, Kp // tk),
        in_specs=[
            pl.BlockSpec((tm, tk), lambda i, j, k: (i, k)),
            pl.BlockSpec((tk, tn), lambda i, j, k: (k, j)),
            pl.BlockSpec((1, tn), lambda i, j, k: (0, j)),
        ],
        out_specs=pl.BlockSpec((tm, tn), lambda i, j, k: (i, j)),
        scratch_shapes=[pltpu.VMEM((tm, tn), jnp.float32)],
        compiler_params=pltpu.CompilerParams(
            dimension_semantics=("parallel", "parallel", "arbitrary"),
            vmem_limit_bytes=_VMEM_LIMIT_BYTES,
        ),
        cost_estimate=cost,
    )(xp, wp, bp)

    if (Bp, Np) == (B, D_out):
        return out_padded
    return out_padded[:B, :D_out]


def _reference(x, w_stack, b_stack):
    # Pure-JAX reference of Sum([Linear_m])(x): per-module loop, summed.
    ref = jnp.zeros((x.shape[0], w_stack.shape[1]), dtype=jnp.float32)
    for m in range(w_stack.shape[0]):
        ref = ref + (x @ w_stack[m].T + b_stack[m])
    return ref


if __name__ == "__main__":
    key = jax.random.PRNGKey(0)

    # Case 1: aligned small shapes (batch=8, hidden=32, 3 submodules).
    B, D_in, D_out, M = 8, 32, 32, 3
    kx, kw, kb, key = jax.random.split(key, 4)
    x = jax.random.normal(kx, (B, D_in), dtype=jnp.float32)
    w_stack = 0.1 * jax.random.normal(kw, (M, D_out, D_in), dtype=jnp.float32)
    b_stack = 0.1 * jax.random.normal(kb, (M, D_out), dtype=jnp.float32)

    out = jax.block_until_ready(sum_of_linears(x, w_stack, b_stack))
    ref = _reference(x, w_stack, b_stack)
    assert out.shape == (B, D_out)
    assert jnp.allclose(out, ref, atol=1e-5, rtol=1e-5), "mismatch vs reference (aligned)"

    # Case 2: unaligned shapes to exercise the padding path.
    B2, D_in2, D_out2, M2 = 12, 72, 40, 2
    kx2, kw2, kb2, key = jax.random.split(key, 4)
    x2 = jax.random.normal(kx2, (B2, D_in2), dtype=jnp.float32)
    w2 = 0.1 * jax.random.normal(kw2, (M2, D_out2, D_in2), dtype=jnp.float32)
    b2 = 0.1 * jax.random.normal(kb2, (M2, D_out2), dtype=jnp.float32)

    out2 = jax.block_until_ready(sum_of_linears(x2, w2, b2))
    ref2 = _reference(x2, w2, b2)
    assert out2.shape == (B2, D_out2)
    assert jnp.allclose(out2, ref2, atol=1e-5, rtol=1e-5), "mismatch vs reference (unaligned)"

    print("KERNEL_OK")
</pallas_src>

<mosaic_0001>
module attributes {stable_mosaic.version = 11 : i64} {
  func.func @sum_linear_kernel(%arg0: i32, %arg1: i32, %arg2: i32, %arg3: memref<8x128xf32, #tpu.memory_space<vmem>>, %arg4: memref<128x128xf32, #tpu.memory_space<vmem>>, %arg5: memref<1x128xf32, #tpu.memory_space<vmem>>, %arg6: memref<8x128xf32, #tpu.memory_space<vmem>>, %arg7: memref<8x128xf32, #tpu.memory_space<vmem>>) attributes {dimension_semantics = [#tpu.dimension_semantics<parallel>, #tpu.dimension_semantics<parallel>, #tpu.dimension_semantics<arbitrary>], iteration_bounds = array<i64: 1, 1, 1>, scalar_prefetch = 0 : i64, scratch_operands = 1 : i64, tpu.core_type = #tpu.core_type<tc>, window_params = [{transform_indices = @transform_0, window_bounds = array<i64: 8, 128>}, {transform_indices = @transform_1, window_bounds = array<i64: 128, 128>}, {transform_indices = @transform_2, window_bounds = array<i64: 1, 128>}, {transform_indices = @transform_3, window_bounds = array<i64: 8, 128>}]} {
    %c0_i32 = arith.constant 0 : i32
    %0 = arith.cmpi eq, %arg2, %c0_i32 : i32
    %1 = arith.extui %0 : i1 to i32
    %c0_i32_0 = arith.constant 0 : i32
    %2 = arith.cmpi ne, %1, %c0_i32_0 : i32
    scf.if %2 {
      %cst_10 = arith.constant 0.000000e+00 : f32
      %12 = vector.broadcast %cst_10 : f32 to vector<8x128xf32>
      %c0_11 = arith.constant 0 : index
      %c0_12 = arith.constant 0 : index
      %13 = vector.load %arg7[%c0_11, %c0_12] : memref<8x128xf32, #tpu.memory_space<vmem>>, vector<8x128xf32>
      tpu.vector_store %arg7[%c0_11, %c0_12], %12 {strides = array<i32>} : memref<8x128xf32, #tpu.memory_space<vmem>>, vector<8x128xf32>,
    } else {
    }
    %c0 = arith.constant 0 : index
    %c0_1 = arith.constant 0 : index
    %3 = vector.load %arg7[%c0, %c0_1] : memref<8x128xf32, #tpu.memory_space<vmem>>, vector<8x128xf32>
    %c0_2 = arith.constant 0 : index
    %c0_3 = arith.constant 0 : index
    %4 = vector.load %arg3[%c0_2, %c0_3] : memref<8x128xf32, #tpu.memory_space<vmem>>, vector<8x128xf32>
    %c0_4 = arith.constant 0 : index
    %c0_5 = arith.constant 0 : index
    %5 = vector.load %arg4[%c0_4, %c0_5] : memref<128x128xf32, #tpu.memory_space<vmem>>, vector<128x128xf32>
    %cst = arith.constant dense<0.000000e+00> : vector<8x128xf32>
    %6 = tpu.matmul %4, %5, %cst {dimension_numbers = #tpu.dot_dimension_numbers<[1], [0], [0], [1], [0, 0, 1, 1], [], []>} : vector<8x128xf32>, vector<128x128xf32>, vector<8x128xf32> -> vector<8x128xf32>
    %7 = arith.addf %3, %6 : vector<8x128xf32>
    %c0_6 = arith.constant 0 : index
    %c0_7 = arith.constant 0 : index
    %8 = vector.load %arg7[%c0_6, %c0_7] : memref<8x128xf32, #tpu.memory_space<vmem>>, vector<8x128xf32>
    tpu.vector_store %arg7[%c0_6, %c0_7], %7 {strides = array<i32>} : memref<8x128xf32, #tpu.memory_space<vmem>>, vector<8x128xf32>,
    %c0_i32_8 = arith.constant 0 : i32
    %9 = arith.cmpi eq, %arg2, %c0_i32_8 : i32
    %10 = arith.extui %9 : i1 to i32
    %c0_i32_9 = arith.constant 0 : i32
    %11 = arith.cmpi ne, %10, %c0_i32_9 : i32
    scf.if %11 {
      %c0_10 = arith.constant 0 : index
      %c0_11 = arith.constant 0 : index
      %12 = vector.load %arg7[%c0_10, %c0_11] : memref<8x128xf32, #tpu.memory_space<vmem>>, vector<8x128xf32>
      %c0_12 = arith.constant 0 : index
      %c0_13 = arith.constant 0 : index
      %13 = vector.load %arg5[%c0_12, %c0_13] : memref<1x128xf32, #tpu.memory_space<vmem>>, vector<1x128xf32>
      %14 = vector.broadcast %13 : vector<1x128xf32> to vector<8x128xf32>
      %15 = arith.addf %12, %14 : vector<8x128xf32>
      %c0_14 = arith.constant 0 : index
      %c0_15 = arith.constant 0 : index
      %16 = vector.load %arg6[%c0_14, %c0_15] : memref<8x128xf32, #tpu.memory_space<vmem>>, vector<8x128xf32>
      tpu.vector_store %arg6[%c0_14, %c0_15], %15 {strides = array<i32>} : memref<8x128xf32, #tpu.memory_space<vmem>>, vector<8x128xf32>,
    } else {
    }
    return
  }
  func.func @transform_0(%arg0: i32, %arg1: i32, %arg2: i32) -> (i32, i32) {
    %c0_i32 = arith.constant 0 : i32
    return %arg0, %arg2 : i32, i32
  }
  func.func @transform_1(%arg0: i32, %arg1: i32, %arg2: i32) -> (i32, i32) {
    %c0_i32 = arith.constant 0 : i32
    return %arg2, %arg1 : i32, i32
  }
  func.func @transform_2(%arg0: i32, %arg1: i32, %arg2: i32) -> (i32, i32) {
    %c0_i32 = arith.constant 0 : i32
    %c0_i32_0 = arith.constant 0 : i32
    return %c0_i32, %arg1 : i32, i32
  }
  func.func @transform_3(%arg0: i32, %arg1: i32, %arg2: i32) -> (i32, i32) {
    %c0_i32 = arith.constant 0 : i32
    return %arg0, %arg1 : i32, i32
  }
}

</mosaic_0001>

<llo_original>
// kernel: sum_of_linears.1
$region0: #{sum_of_linears.1}
  #allocation0 [shape = 'u32[]', space=smem, size = 0x4, offset = 0x4, fixed_abs, tag = 'smem constant byte address 0x4 - core index']
  #allocation1 [shape = 'u32[72,128]{1,0:T(1,128)}', space=vmem, size = 0x9000, scoped, tag = 'internal scratch']
  #allocation2 [shape = 'f32[8,128]{1,0:T(8,128)}', space=vmem, size = 0x1000, scoped, tag = 'scratch operand']
  %s0 = inlined_call_operand.vmem [shape: f32[8,128], index: 0, kind: input, shape index: {}]
  %s1 = inlined_call_operand.vmem [shape: f32[128,128], index: 1, kind: input, shape index: {}]
  %s2 = inlined_call_operand.vmem [shape: f32[1,128], index: 2, kind: input, shape index: {}]
  %s3 = inlined_call_operand.hbm [shape: f32[8,128], index: 3, kind: output, shape index: {}]
  %s4 = sld [smem:[#allocation0]]
  $region30: #{sum_of_linears.1} parent=0
    _
  %s6 = ssub.s32 1, %s4
  %s7 = scalar_select 0, %s6, %s4
  $region1: #{sum_of_linears.1} parent=0
    #allocation3 [shape = 'u8[4096]{0}', space=vmem, size = 0x1000, scoped, tag = 'output window, operand 0, single buffered']
    #allocation4 [shape = 's32[1]{0}', space=sflag, size = 0x4, scoped, tag = 'scoped memory for sum_of_linears.1']
    %8 = vsyncpa [#allocation4], 0
    // Predicated region
    $region2: #{sum_of_linears.1} parent=1 // pred_check
      _
    $region3: #{sum_of_linears.1} parent=1 // pred_check_branch
      %10 = sbr.rel (0) target = $region5
    $region4: #{sum_of_linears.1} parent=1 // pred_region
      _
    $region5: #{sum_of_linears.1} parent=1 // pred_fallthru
      _
    // Predicated region
    $region6: #{sum_of_linears.1} parent=1 // pred_check
      _
    $region7: #{sum_of_linears.1} parent=1 // pred_check_branch
      %12 = sbr.rel (0) target = $region9
    $region8: #{sum_of_linears.1} parent=1 // pred_region
      _
    $region9: #{sum_of_linears.1} parent=1 // pred_fallthru
      _
    // Predicated region
    $region10: #{sum_of_linears.1} parent=1 // pred_check
      _
    $region11: #{sum_of_linears.1} parent=1 // pred_check_branch
      %14 = sbr.rel (0) target = $region13
    $region12: #{sum_of_linears.1} parent=1 // pred_region
      _
    $region13: #{sum_of_linears.1} parent=1 // pred_fallthru
      _
    %p15 = scmp.eq.s32.totalorder 0, 0
    // Predicated region
    $region14: #{sum_of_linears.1} parent=1 // pred_check
      %p16 = pneg %p15
    $region15: #{sum_of_linears.1} parent=1 // pred_check_branch
      %18 = sbr.rel (%p16) target = $region17
    $region16: #{sum_of_linears.1} parent=1 // pred_region
      %19 = vst [vmem:[#allocation2] sm:$0xff] 0.0
    $region17: #{sum_of_linears.1} parent=1 // pred_fallthru
      _
    %v20 = vld [vmem:[#allocation2] sm:$0xff]
    %v21 = vld [vmem:[%s0] sm:$0xff]
    %v22 = vld [vmem:[%s1] sm:$0xff]
    %v23 = vld [vmem:[%s1 + $0x8] sm:$0xff]
    %v24 = vld [vmem:[%s1 + $0x10] sm:$0xff]
    %v25 = vld [vmem:[%s1 + $0x18] sm:$0xff]
    %v26 = vld [vmem:[%s1 + $0x20] sm:$0xff]
    %v27 = vld [vmem:[%s1 + $0x28] sm:$0xff]
    %v28 = vld [vmem:[%s1 + $0x30] sm:$0xff]
    %v29 = vld [vmem:[%s1 + $0x38] sm:$0xff]
    %v30 = vld [vmem:[%s1 + $0x40] sm:$0xff]
    %v31 = vld [vmem:[%s1 + $0x48] sm:$0xff]
    %v32 = vld [vmem:[%s1 + $0x50] sm:$0xff]
    %v33 = vld [vmem:[%s1 + $0x58] sm:$0xff]
    %v34 = vld [vmem:[%s1 + $0x60] sm:$0xff]
    %v35 = vld [vmem:[%s1 + $0x68] sm:$0xff]
    %v36 = vld [vmem:[%s1 + $0x70] sm:$0xff]
    %v37 = vld [vmem:[%s1 + $0x78] sm:$0xff]
    %38 = vmatpush.msra.mxu0 %v37
    %39 = vmatpush.msra.mxu0 %v36
    %40 = vmatpush.msra.mxu0 %v35
    %41 = vmatpush.msra.mxu0 %v34
    %42 = vmatpush.msra.mxu0 %v33
    %43 = vmatpush.msra.mxu0 %v32
    %44 = vmatpush.msra.mxu0 %v31
    %45 = vmatpush.msra.mxu0 %v30
    %46 = vmatpush.msra.mxu0 %v29
    %47 = vmatpush.msra.mxu0 %v28
    %48 = vmatpush.msra.mxu0 %v27
    %49 = vmatpush.msra.mxu0 %v26
    %50 = vmatpush.msra.mxu0 %v25
    %51 = vmatpush.msra.mxu0 %v24
    %52 = vmatpush.msra.mxu0 %v23
    %53 = vmatpush.msra.mxu0 %v22
    %54 = vmatmul.f32.gmra.mxu0 %v21
    %v55 = vpop.f32.mrf.mxu0
    %v56 = vadd.f32 0.0, %v55
    %57 = vdwg.mxu0
    %v58 = vadd.f32 %v20, %v56
    %59 = vst [vmem:[#allocation2] sm:$0xff] %v58
    // Predicated region
    $region18: #{sum_of_linears.1} parent=1 // pred_check
      %p60 = pneg %p15
    $region19: #{sum_of_linears.1} parent=1 // pred_check_branch
      %62 = sbr.rel (%p60) target = $region21
    $region20: #{sum_of_linears.1} parent=1 // pred_region
      %v63 = vld [vmem:[#allocation2] sm:$0xff]
      %v64 = vld [vmem:[%s2] sm:$0x1]
      %v66 = vperm.slane %v64, 0
      %v68 = vadd.f32 %v63, %v66
      %69 = vst [vmem:[#allocation3] sm:$0xff] %v68
    $region21: #{sum_of_linears.1} parent=1 // pred_fallthru
      _
    // Predicated region
    $region22: #{sum_of_linears.1} parent=1 // pred_check
      _
    $region23: #{sum_of_linears.1} parent=1 // pred_check_branch
      %71 = sbr.rel (0) target = $region25
    $region24: #{sum_of_linears.1} parent=1 // pred_region
      %73 = vsyncadd [#allocation4], 0
      %s75 = sshll.u32 [#allocation3], 4
      %s76 = int_to_ptr.vmem [resolvable:$true] %s75
      %s77 = sshll.u32 %s3, 4
      %s78 = int_to_ptr.hbm [resolvable:$true] %s77
      %80 = dma.vmem_to_hbm [thread:$0]  %s76, 128, %s78, [#allocation4]
    $region25: #{sum_of_linears.1} parent=1 // pred_fallthru
      _
    // Predicated region
    $region26: #{sum_of_linears.1} parent=1 // pred_check
      _
    $region27: #{sum_of_linears.1} parent=1 // pred_check_branch
      %82 = sbr.rel (0) target = $region29
    $region28: #{sum_of_linears.1} parent=1 // pred_region
      %84 = dma.done [#allocation4], 128
    $region29: #{sum_of_linears.1} parent=1 // pred_fallthru
      _
    %85 = vsyncpa [#allocation4], 1

</llo_original>
